<compile_context>
chip_gen: v7x
topology: tpu7x:2x2x1
jax: 0.10.0
libtpu: 0.0.40
codegen_flags: <defaults>
</compile_context>

<pallas_src>
import functools
import math

import jax
import jax.numpy as jnp
from jax.experimental import pallas as pl
from jax.experimental.pallas import tpu as pltpu

EPS = 0.0  # GINConv default (train_eps=False)


def _round_up(v, m):
    return ((v + m - 1) // m) * m


def _vmem_cap_bytes():
    """~75% of physical VMEM (generation-aware): ~48 MiB on v7x, ~96 MiB on v5e/v6e."""
    try:
        cap = int(pltpu.get_tpu_info().vmem_capacity_bytes)
    except Exception:  # no hardware info available (e.g. interpret mode)
        cap = 64 * 1024 * 1024
    return max(16 * 1024 * 1024, (cap * 3) // 4)


def _gin_mlp_kernel(adj_ref, x_ref, w1_ref, b1_ref, w2_ref, b2_ref, o_ref, acc_ref,
                    *, block_k, x_resident):
    k = pl.program_id(1)

    @pl.when(k == 0)
    def _init():
        acc_ref[...] = jnp.zeros_like(acc_ref)

    # Neighbor aggregation on the MXU.  The (1 + eps) * I self-loop term is folded
    # into the adjacency tiles, so acc accumulates h = (1+eps)*x + agg directly.
    if x_resident:
        start = pl.multiple_of(k * block_k, block_k)
        x_tile = x_ref[pl.ds(start, block_k), :]
    else:
        x_tile = x_ref[...]
    acc_ref[...] += jnp.dot(adj_ref[...], x_tile,
                            preferred_element_type=jnp.float32)

    @pl.when(k == pl.num_programs(1) - 1)
    def _finish():
        # Fused MLP epilogue: Linear -> ReLU -> Linear.  Matmul operands in the
        # compute dtype (bf16 by default); bias add + ReLU stay f32 (v5e-safe VPU).
        h = acc_ref[...].astype(w1_ref.dtype)
        h1 = jnp.dot(h, w1_ref[...], preferred_element_type=jnp.float32) + b1_ref[...]
        h1 = jnp.maximum(h1, 0.0)
        out = jnp.dot(h1.astype(w2_ref.dtype), w2_ref[...],
                      preferred_element_type=jnp.float32) + b2_ref[...]
        o_ref[...] = out.astype(o_ref.dtype)


def na_mlp_aggregator(x, edge_index, w1, b1, w2, b2, *,
                      eps=EPS, compute_dtype=jnp.bfloat16,
                      block_m=256, block_k=512, x_resident=None):
    """GINConv(eps) + MLP(Linear->ReLU->Linear), fused in one Pallas kernel.

    x:          [N, in_dim] f32 node features
    edge_index: [2, E] int32 (row 0 = source, row 1 = target)
    w1: [in_dim, w], b1: [1, w], w2: [w, out_dim], b2: [1, out_dim]
    compute_dtype: bf16 (default, recommended on all generations) or f32.
    """
    n, in_dim = x.shape
    width = w1.shape[1]
    out_dim = w2.shape[1]

    # Lane-dense feature padding (>=128) and node padding to a multiple of the tile
    # sizes (tiles clamped so tiny graphs don't pad all the way to 256/512).
    dp = _round_up(in_dim, 128)
    wp = _round_up(width, 128)
    op = _round_up(out_dim, 128)
    n_min = _round_up(n, 128)
    block_m = min(block_m, n_min)
    block_k = min(block_k, n_min)
    n_pad = _round_up(n, math.lcm(block_m, block_k))

    itemsize = jnp.dtype(compute_dtype).itemsize
    vmem_cap = _vmem_cap_bytes()

    # Keep x VMEM-resident (read from HBM exactly once) unless that alone would eat
    # too much of the budget, in which case fall back to streaming it per k-tile.
    x_res_bytes = n_pad * dp * itemsize
    if x_resident is None:
        x_resident = x_res_bytes <= max(4 * 1024 * 1024, vmem_cap // 8)

    src = edge_index[0].astype(jnp.int32)
    dst = edge_index[1].astype(jnp.int32)

    # Glue: A'[i, j] = #edges j -> i, plus (1 + eps) on the diagonal, built with one
    # scatter chain directly in the compute dtype (degree counts are small integers,
    # exact in bf16 for per-pair multiplicity <= 256).
    diag = jnp.arange(n_pad, dtype=jnp.int32)
    adj = (jnp.zeros((n_pad, n_pad), compute_dtype)
           .at[dst, src].add(jnp.ones(src.shape, compute_dtype))
           .at[diag, diag].add(jnp.asarray(1.0 + eps, compute_dtype)))

    # Zero-padded operands (padding rows/cols contribute nothing; padded output
    # rows/columns are sliced off below).
    xp = jnp.zeros((n_pad, dp), compute_dtype).at[:n, :in_dim].set(
        x.astype(compute_dtype))
    w1p = jnp.zeros((dp, wp), compute_dtype).at[:in_dim, :width].set(
        w1.astype(compute_dtype))
    b1p = jnp.zeros((1, wp), jnp.float32).at[:, :width].set(b1.astype(jnp.float32))
    w2p = jnp.zeros((wp, op), compute_dtype).at[:width, :out_dim].set(
        w2.astype(compute_dtype))
    b2p = jnp.zeros((1, op), jnp.float32).at[:, :out_dim].set(b2.astype(jnp.float32))

    grid = (n_pad // block_m, n_pad // block_k)

    # Grid-invariant operands are single-buffered; only the adjacency stream keeps the
    # default depth-2 pipeline (sweep pl.Buffered(3) there if DMA is still exposed).
    const = pl.Buffered(1)
    if x_resident:
        x_spec = pl.BlockSpec((n_pad, dp), lambda i, k: (0, 0), pipeline_mode=const)
    else:
        x_spec = pl.BlockSpec((block_k, dp), lambda i, k: (k, 0))

    in_specs = [
        pl.BlockSpec((block_m, block_k), lambda i, k: (i, k)),             # A' tile
        x_spec,                                                            # x
        pl.BlockSpec((dp, wp), lambda i, k: (0, 0), pipeline_mode=const),  # w1
        pl.BlockSpec((1, wp), lambda i, k: (0, 0), pipeline_mode=const),   # b1
        pl.BlockSpec((wp, op), lambda i, k: (0, 0), pipeline_mode=const),  # w2
        pl.BlockSpec((1, op), lambda i, k: (0, 0), pipeline_mode=const),   # b2
    ]

    # VMEM budget: depth-2 adjacency stream + x (resident or depth-2 stream) +
    # single-buffered weights/biases + f32 double-buffered output + f32 accumulator,
    # plus a small margin for compiler-internal scratch; capped generation-aware.
    adj_bytes = 2 * block_m * block_k * itemsize
    x_bytes = x_res_bytes if x_resident else 2 * block_k * dp * itemsize
    weight_bytes = (dp * wp + wp * op) * itemsize + (wp + op) * 4
    out_bytes = 2 * block_m * op * 4
    acc_bytes = block_m * dp * 4
    need = adj_bytes + x_bytes + weight_bytes + out_bytes + acc_bytes
    vmem_limit = int(min(vmem_cap, max(need + (2 << 20), 16 << 20)))

    # Advisory cost estimate so XLA can schedule the adjacency scatter around the call.
    x_hbm_bytes = x_res_bytes if x_resident else (n_pad // block_m) * n_pad * dp * itemsize
    cost = pl.CostEstimate(
        flops=int(2 * n_pad * n_pad * dp + 2 * n_pad * (dp * wp + wp * op)),
        transcendentals=0,
        bytes_accessed=int(n_pad * n_pad * itemsize + x_hbm_bytes
                           + weight_bytes + n_pad * op * 4),
    )

    kernel = functools.partial(_gin_mlp_kernel, block_k=block_k,
                               x_resident=x_resident)

    out_padded = pl.pallas_call(
        kernel,
        out_shape=jax.ShapeDtypeStruct((n_pad, op), jnp.float32),
        grid_spec=pltpu.PrefetchScalarGridSpec(
            num_scalar_prefetch=0,
            grid=grid,
            in_specs=in_specs,
            out_specs=pl.BlockSpec((block_m, op), lambda i, k: (i, 0)),
            scratch_shapes=[pltpu.VMEM((block_m, dp), jnp.float32)],
        ),
        compiler_params=pltpu.CompilerParams(
            dimension_semantics=("parallel", "arbitrary"),
            vmem_limit_bytes=vmem_limit,
        ),
        cost_estimate=cost,
    )(adj, xp, w1p, b1p, w2p, b2p)

    return out_padded[:n, :out_dim]


def _reference(x, edge_index, w1, b1, w2, b2, eps=EPS):
    src, dst = edge_index[0], edge_index[1]
    agg = jnp.zeros_like(x).at[dst].add(x[src])
    h = (1.0 + eps) * x + agg
    h1 = jnp.maximum(h @ w1 + b1, 0.0)
    return h1 @ w2 + b2


if __name__ == "__main__":
    # Small shapes consistent with the module (d == 2 MLP branch).
    N, E = 256, 1024
    in_dim, width, out_dim = 32, 64, 16

    key = jax.random.PRNGKey(0)
    kx, ke1, ke2, kw1, kb1, kw2, kb2 = jax.random.split(key, 7)

    x = jax.random.normal(kx, (N, in_dim), jnp.float32)
    src = jax.random.randint(ke1, (E,), 0, N, jnp.int32)
    dst = jax.random.randint(ke2, (E,), 0, N, jnp.int32)
    edge_index = jnp.stack([src, dst], axis=0)

    # Deterministic params (shapes follow nn.Linear(in, out); stored transposed).
    w1 = jax.random.normal(kw1, (in_dim, width), jnp.float32) / jnp.sqrt(in_dim)
    b1 = jax.random.normal(kb1, (1, width), jnp.float32) * 0.01
    w2 = jax.random.normal(kw2, (width, out_dim), jnp.float32) / jnp.sqrt(width)
    b2 = jax.random.normal(kb2, (1, out_dim), jnp.float32) * 0.01

    ref = _reference(x, edge_index, w1, b1, w2, b2)

    # Default path: bf16 streams, f32 accumulation (tiles clamped -> grid (1, 1)).
    out = jax.block_until_ready(na_mlp_aggregator(x, edge_index, w1, b1, w2, b2))
    assert out.shape == (N, out_dim)
    assert bool(jnp.all(jnp.isfinite(out)))
    assert float(jnp.max(jnp.abs(out - ref))) < 0.5, \
        f"bf16 max abs err {float(jnp.max(jnp.abs(out - ref)))}"

    # Multi-tile grid (2, 2): exercises accumulator init/finish + resident-x slicing.
    out_t = jax.block_until_ready(
        na_mlp_aggregator(x, edge_index, w1, b1, w2, b2, block_m=128, block_k=128))
    assert float(jnp.max(jnp.abs(out_t - ref))) < 0.5, \
        f"bf16 tiled max abs err {float(jnp.max(jnp.abs(out_t - ref)))}"

    # Streamed-x fallback path (used when x would not fit resident in VMEM).
    out_s = jax.block_until_ready(
        na_mlp_aggregator(x, edge_index, w1, b1, w2, b2,
                          block_m=128, block_k=128, x_resident=False))
    assert float(jnp.max(jnp.abs(out_s - ref))) < 0.5, \
        f"bf16 streamed max abs err {float(jnp.max(jnp.abs(out_s - ref)))}"

    # f32 compute path matches the PyTorch module's precision tightly.
    out_f32 = jax.block_until_ready(
        na_mlp_aggregator(x, edge_index, w1, b1, w2, b2,
                          compute_dtype=jnp.float32, block_m=128, block_k=128))
    assert jnp.allclose(out_f32, ref, atol=1e-3, rtol=1e-3), \
        f"f32 max abs err {float(jnp.max(jnp.abs(out_f32 - ref)))}"

    print("KERNEL_OK")
</pallas_src>

<mosaic_0001>
module attributes {stable_mosaic.version = 11 : i64} {
  func.func @_gin_mlp_kernel(%arg0: i32, %arg1: i32, %arg2: memref<256x256xbf16, #tpu.memory_space<vmem>>, %arg3: memref<256x128xbf16, #tpu.memory_space<vmem>>, %arg4: memref<128x128xbf16, #tpu.memory_space<vmem>>, %arg5: memref<1x128xf32, #tpu.memory_space<vmem>>, %arg6: memref<128x128xbf16, #tpu.memory_space<vmem>>, %arg7: memref<1x128xf32, #tpu.memory_space<vmem>>, %arg8: memref<256x128xf32, #tpu.memory_space<vmem>>, %arg9: memref<256x128xf32, #tpu.memory_space<vmem>>) attributes {dimension_semantics = [#tpu.dimension_semantics<parallel>, #tpu.dimension_semantics<arbitrary>], iteration_bounds = array<i64: 1, 1>, scalar_prefetch = 0 : i64, scratch_operands = 1 : i64, tpu.core_type = #tpu.core_type<tc>, window_params = [{transform_indices = @transform_0, window_bounds = array<i64: 256, 256>}, {pipeline_mode = #tpu.pipeline_mode<synchronous>, transform_indices = @transform_1, window_bounds = array<i64: 256, 128>}, {pipeline_mode = #tpu.pipeline_mode<synchronous>, transform_indices = @transform_2, window_bounds = array<i64: 128, 128>}, {pipeline_mode = #tpu.pipeline_mode<synchronous>, transform_indices = @transform_3, window_bounds = array<i64: 1, 128>}, {pipeline_mode = #tpu.pipeline_mode<synchronous>, transform_indices = @transform_4, window_bounds = array<i64: 128, 128>}, {pipeline_mode = #tpu.pipeline_mode<synchronous>, transform_indices = @transform_5, window_bounds = array<i64: 1, 128>}, {transform_indices = @transform_6, window_bounds = array<i64: 256, 128>}]} {
    %c0_i32 = arith.constant 0 : i32
    %0 = arith.cmpi eq, %arg1, %c0_i32 : i32
    %1 = arith.extui %0 : i1 to i32
    %c0_i32_0 = arith.constant 0 : i32
    %2 = arith.cmpi ne, %1, %c0_i32_0 : i32
    scf.if %2 {
      %cst_9 = arith.constant 0.000000e+00 : f32
      %15 = vector.broadcast %cst_9 : f32 to vector<256x128xf32>
      %c0_10 = arith.constant 0 : index
      %c0_11 = arith.constant 0 : index
      %16 = vector.load %arg9[%c0_10, %c0_11] : memref<256x128xf32, #tpu.memory_space<vmem>>, vector<256x128xf32>
      tpu.vector_store %arg9[%c0_10, %c0_11], %15 {strides = array<i32>} : memref<256x128xf32, #tpu.memory_space<vmem>>, vector<256x128xf32>,
    } else {
    }
    %c256_i32 = arith.constant 256 : i32
    %3 = arith.muli %arg1, %c256_i32 : i32
    %4 = tpu.assume_multiple %3, 256 : i32
    %5 = arith.index_cast %4 : i32 to index
    %c0 = arith.constant 0 : index
    %6 = vector.load %arg3[%5, %c0] : memref<256x128xbf16, #tpu.memory_space<vmem>>, vector<256x128xbf16>
    %c0_1 = arith.constant 0 : index
    %c0_2 = arith.constant 0 : index
    %7 = vector.load %arg9[%c0_1, %c0_2] : memref<256x128xf32, #tpu.memory_space<vmem>>, vector<256x128xf32>
    %c0_3 = arith.constant 0 : index
    %c0_4 = arith.constant 0 : index
    %8 = vector.load %arg2[%c0_3, %c0_4] : memref<256x256xbf16, #tpu.memory_space<vmem>>, vector<256x256xbf16>
    %cst = arith.constant dense<0.000000e+00> : vector<256x128xf32>
    %9 = tpu.matmul %8, %6, %cst {dimension_numbers = #tpu.dot_dimension_numbers<[1], [0], [0], [1], [0, 0, 1, 1], [], []>} : vector<256x256xbf16>, vector<256x128xbf16>, vector<256x128xf32> -> vector<256x128xf32>
    %10 = arith.addf %7, %9 : vector<256x128xf32>
    %c0_5 = arith.constant 0 : index
    %c0_6 = arith.constant 0 : index
    %11 = vector.load %arg9[%c0_5, %c0_6] : memref<256x128xf32, #tpu.memory_space<vmem>>, vector<256x128xf32>
    tpu.vector_store %arg9[%c0_5, %c0_6], %10 {strides = array<i32>} : memref<256x128xf32, #tpu.memory_space<vmem>>, vector<256x128xf32>,
    %c0_i32_7 = arith.constant 0 : i32
    %12 = arith.cmpi eq, %arg1, %c0_i32_7 : i32
    %13 = arith.extui %12 : i1 to i32
    %c0_i32_8 = arith.constant 0 : i32
    %14 = arith.cmpi ne, %13, %c0_i32_8 : i32
    scf.if %14 {
      %c0_9 = arith.constant 0 : index
      %c0_10 = arith.constant 0 : index
      %15 = vector.load %arg9[%c0_9, %c0_10] : memref<256x128xf32, #tpu.memory_space<vmem>>, vector<256x128xf32>
      %16 = arith.truncf %15 : vector<256x128xf32> to vector<256x128xbf16>
      %c0_11 = arith.constant 0 : index
      %c0_12 = arith.constant 0 : index
      %17 = vector.load %arg4[%c0_11, %c0_12] : memref<128x128xbf16, #tpu.memory_space<vmem>>, vector<128x128xbf16>
      %cst_13 = arith.constant dense<0.000000e+00> : vector<256x128xf32>
      %18 = tpu.matmul %16, %17, %cst_13 {dimension_numbers = #tpu.dot_dimension_numbers<[1], [0], [0], [1], [0, 0, 1, 1], [], []>} : vector<256x128xbf16>, vector<128x128xbf16>, vector<256x128xf32> -> vector<256x128xf32>
      %c0_14 = arith.constant 0 : index
      %c0_15 = arith.constant 0 : index
      %19 = vector.load %arg5[%c0_14, %c0_15] : memref<1x128xf32, #tpu.memory_space<vmem>>, vector<1x128xf32>
      %20 = vector.broadcast %19 : vector<1x128xf32> to vector<256x128xf32>
      %21 = arith.addf %18, %20 : vector<256x128xf32>
      %cst_16 = arith.constant 0.000000e+00 : f32
      %22 = vector.broadcast %cst_16 : f32 to vector<256x128xf32>
      %23 = arith.maximumf %21, %22 : vector<256x128xf32>
      %24 = arith.truncf %23 : vector<256x128xf32> to vector<256x128xbf16>
      %c0_17 = arith.constant 0 : index
      %c0_18 = arith.constant 0 : index
      %25 = vector.load %arg6[%c0_17, %c0_18] : memref<128x128xbf16, #tpu.memory_space<vmem>>, vector<128x128xbf16>
      %cst_19 = arith.constant dense<0.000000e+00> : vector<256x128xf32>
      %26 = tpu.matmul %24, %25, %cst_19 {dimension_numbers = #tpu.dot_dimension_numbers<[1], [0], [0], [1], [0, 0, 1, 1], [], []>} : vector<256x128xbf16>, vector<128x128xbf16>, vector<256x128xf32> -> vector<256x128xf32>
      %c0_20 = arith.constant 0 : index
      %c0_21 = arith.constant 0 : index
      %27 = vector.load %arg7[%c0_20, %c0_21] : memref<1x128xf32, #tpu.memory_space<vmem>>, vector<1x128xf32>
      %28 = vector.broadcast %27 : vector<1x128xf32> to vector<256x128xf32>
      %29 = arith.addf %26, %28 : vector<256x128xf32>
      %c0_22 = arith.constant 0 : index
      %c0_23 = arith.constant 0 : index
      %30 = vector.load %arg8[%c0_22, %c0_23] : memref<256x128xf32, #tpu.memory_space<vmem>>, vector<256x128xf32>
      tpu.vector_store %arg8[%c0_22, %c0_23], %29 {strides = array<i32>} : memref<256x128xf32, #tpu.memory_space<vmem>>, vector<256x128xf32>,
    } else {
    }
    return
  }
  func.func @transform_0(%arg0: i32, %arg1: i32) -> (i32, i32) {
    %c0_i32 = arith.constant 0 : i32
    return %arg0, %arg1 : i32, i32
  }
  func.func @transform_1(%arg0: i32, %arg1: i32) -> (i32, i32) {
    %c0_i32 = arith.constant 0 : i32
    %c0_i32_0 = arith.constant 0 : i32
    %c0_i32_1 = arith.constant 0 : i32
    return %c0_i32, %c0_i32_0 : i32, i32
  }
  func.func @transform_2(%arg0: i32, %arg1: i32) -> (i32, i32) {
    %c0_i32 = arith.constant 0 : i32
    %c0_i32_0 = arith.constant 0 : i32
    %c0_i32_1 = arith.constant 0 : i32
    return %c0_i32, %c0_i32_0 : i32, i32
  }
  func.func @transform_3(%arg0: i32, %arg1: i32) -> (i32, i32) {
    %c0_i32 = arith.constant 0 : i32
    %c0_i32_0 = arith.constant 0 : i32
    %c0_i32_1 = arith.constant 0 : i32
    return %c0_i32, %c0_i32_0 : i32, i32
  }
  func.func @transform_4(%arg0: i32, %arg1: i32) -> (i32, i32) {
    %c0_i32 = arith.constant 0 : i32
    %c0_i32_0 = arith.constant 0 : i32
    %c0_i32_1 = arith.constant 0 : i32
    return %c0_i32, %c0_i32_0 : i32, i32
  }
  func.func @transform_5(%arg0: i32, %arg1: i32) -> (i32, i32) {
    %c0_i32 = arith.constant 0 : i32
    %c0_i32_0 = arith.constant 0 : i32
    %c0_i32_1 = arith.constant 0 : i32
    return %c0_i32, %c0_i32_0 : i32, i32
  }
  func.func @transform_6(%arg0: i32, %arg1: i32) -> (i32, i32) {
    %c0_i32 = arith.constant 0 : i32
    %c0_i32_0 = arith.constant 0 : i32
    return %arg0, %c0_i32 : i32, i32
  }
}

</mosaic_0001>

<llo_original>
// kernel: tpu_custom_call.1
$region0: #{tpu_custom_call.1}
  #allocation0 [shape = 'u32[]', space=smem, size = 0x4, offset = 0x4, fixed_abs, tag = 'smem constant byte address 0x4 - core index']
  #allocation1 [shape = 'u32[144,128]{1,0:T(1,128)}', space=vmem, size = 0x12000, scoped, tag = 'internal scratch']
  #allocation2 [shape = 'f32[256,128]{1,0:T(8,128)}', space=vmem, size = 0x20000, scoped, tag = 'scratch operand']
  %s0 = inlined_call_operand.hbm [shape: bf16[256,256], index: 0, kind: input, shape index: {}]
  %s1 = inlined_call_operand.hbm [shape: bf16[256,128], index: 1, kind: input, shape index: {}]
  %s2 = inlined_call_operand.hbm [shape: bf16[128,128], index: 2, kind: input, shape index: {}]
  %s3 = inlined_call_operand.vmem [shape: f32[1,128], index: 3, kind: input, shape index: {}]
  %s4 = inlined_call_operand.hbm [shape: bf16[128,128], index: 4, kind: input, shape index: {}]
  %s5 = inlined_call_operand.vmem [shape: f32[1,128], index: 5, kind: input, shape index: {}]
  %s6 = inlined_call_operand.hbm [shape: f32[256,128], index: 6, kind: output, shape index: {}]
  %s7 = sld [smem:[#allocation0]]
  $region58: #{tpu_custom_call.1} parent=0
    _
  %s9 = ssub.s32 1, %s7
  %s10 = scalar_select 0, %s9, %s7
  $region1: #{tpu_custom_call.1} parent=0
    #allocation3 [shape = 'u8[131072]{0}', space=vmem, size = 0x20000, scoped, tag = 'input window, operand 0, single buffered']
    #allocation4 [shape = 's32[1]{0}', space=sflag, size = 0x4, scoped, tag = 'scoped memory for tpu_custom_call.1']
    #allocation5 [shape = 's32[1]{0}', space=sflag, size = 0x4, scoped, tag = 'scoped memory for tpu_custom_call.1']
    #allocation6 [shape = 'u8[65536]{0}', space=vmem, size = 0x10000, scoped, tag = 'input window, operand 1, single buffered']
    #allocation7 [shape = 's32[1]{0}', space=sflag, size = 0x4, scoped, tag = 'scoped memory for tpu_custom_call.1']
    #allocation8 [shape = 'u8[32768]{0}', space=vmem, size = 0x8000, scoped, tag = 'input window, operand 2, single buffered']
    #allocation9 [shape = 'u8[32768]{0}', space=vmem, size = 0x8000, scoped, tag = 'input window, operand 4, single buffered']
    #allocation10 [shape = 's32[1]{0}', space=sflag, size = 0x4, scoped, tag = 'scoped memory for tpu_custom_call.1']
    #allocation11 [shape = 'u8[131072]{0}', space=vmem, size = 0x20000, scoped, tag = 'output window, operand 0, single buffered']
    %11 = vsyncpa [#allocation4], 0
    %12 = vsyncpa [#allocation7], 0
    %13 = vsyncpa [#allocation10], 0
    %14 = vsyncpa [#allocation5], 0
    // Predicated region
    $region2: #{tpu_custom_call.1} parent=1 // pred_check
      _
    $region3: #{tpu_custom_call.1} parent=1 // pred_check_branch
      %16 = sbr.rel (0) target = $region5
    $region4: #{tpu_custom_call.1} parent=1 // pred_region
      %s18 = ssub.s32 4096, 4096
      %19 = vsyncadd [#allocation4], %s18
      %s20 = sshll.u32 [#allocation3], 4
      %s21 = int_to_ptr.vmem [resolvable:$true] %s20
      %26 = dma.hbm_to_vmem [thread:$0]  %s0, 4096, %s21, [#allocation4], 128, 128, 8
    $region5: #{tpu_custom_call.1} parent=1 // pred_fallthru
      _
    // Predicated region
    $region6: #{tpu_custom_call.1} parent=1 // pred_check
      _
    $region7: #{tpu_custom_call.1} parent=1 // pred_check_branch
      %28 = sbr.rel (0) target = $region9
    $region8: #{tpu_custom_call.1} parent=1 // pred_region
      %s30 = ssub.s32 2048, 2048
      %31 = vsyncadd [#allocation7], %s30
      %s32 = sshll.u32 [#allocation6], 4
      %s33 = int_to_ptr.vmem [resolvable:$true] %s32
      %38 = dma.hbm_to_vmem [thread:$0]  %s1, 2048, %s33, [#allocation7], 64, 64, 4
    $region9: #{tpu_custom_call.1} parent=1 // pred_fallthru
      _
    // Predicated region
    $region10: #{tpu_custom_call.1} parent=1 // pred_check
      _
    $region11: #{tpu_custom_call.1} parent=1 // pred_check_branch
      %40 = sbr.rel (0) target = $region13
    $region12: #{tpu_custom_call.1} parent=1 // pred_region
      %s42 = ssub.s32 1024, 1024
      %43 = vsyncadd [#allocation7], %s42
      %s44 = sshll.u32 [#allocation8], 4
      %s45 = int_to_ptr.vmem [resolvable:$true] %s44
      %50 = dma.hbm_to_vmem [thread:$0]  %s2, 1024, %s45, [#allocation7], 64, 64, 4
    $region13: #{tpu_custom_call.1} parent=1 // pred_fallthru
      _
    // Predicated region
    $region14: #{tpu_custom_call.1} parent=1 // pred_check
      _
    $region15: #{tpu_custom_call.1} parent=1 // pred_check_branch
      %52 = sbr.rel (0) target = $region17
    $region16: #{tpu_custom_call.1} parent=1 // pred_region
      _
    $region17: #{tpu_custom_call.1} parent=1 // pred_fallthru
      _
    // Predicated region
    $region18: #{tpu_custom_call.1} parent=1 // pred_check
      _
    $region19: #{tpu_custom_call.1} parent=1 // pred_check_branch
      %54 = sbr.rel (0) target = $region21
    $region20: #{tpu_custom_call.1} parent=1 // pred_region
      %s56 = ssub.s32 1024, 1024
      %57 = vsyncadd [#allocation10], %s56
      %s58 = sshll.u32 [#allocation9], 4
      %s59 = int_to_ptr.vmem [resolvable:$true] %s58
      %64 = dma.hbm_to_vmem [thread:$0]  %s4, 1024, %s59, [#allocation10], 64, 64, 4
    $region21: #{tpu_custom_call.1} parent=1 // pred_fallthru
      _
    // Predicated region
    $region22: #{tpu_custom_call.1} parent=1 // pred_check
      _
    $region23: #{tpu_custom_call.1} parent=1 // pred_check_branch
      %66 = sbr.rel (0) target = $region25
    $region24: #{tpu_custom_call.1} parent=1 // pred_region
      _
    $region25: #{tpu_custom_call.1} parent=1 // pred_fallthru
      _
    // Predicated region
    $region26: #{tpu_custom_call.1} parent=1 // pred_check
      _
    $region27: #{tpu_custom_call.1} parent=1 // pred_check_branch
      %68 = sbr.rel (0) target = $region29
    $region28: #{tpu_custom_call.1} parent=1 // pred_region
      %69 = dma.done [#allocation4], 4096
    $region29: #{tpu_custom_call.1} parent=1 // pred_fallthru
      _
    // Predicated region
    $region30: #{tpu_custom_call.1} parent=1 // pred_check
      _
    $region31: #{tpu_custom_call.1} parent=1 // pred_check_branch
      %71 = sbr.rel (0) target = $region33
    $region32: #{tpu_custom_call.1} parent=1 // pred_region
      %72 = dma.done [#allocation7], 2048
    $region33: #{tpu_custom_call.1} parent=1 // pred_fallthru
      _
    // Predicated region
    $region34: #{tpu_custom_call.1} parent=1 // pred_check
      _
    $region35: #{tpu_custom_call.1} parent=1 // pred_check_branch
      %74 = sbr.rel (0) target = $region37
    $region36: #{tpu_custom_call.1} parent=1 // pred_region
      %75 = dma.done [#allocation7], 1024
    $region37: #{tpu_custom_call.1} parent=1 // pred_fallthru
      _
    // Predicated region
    $region38: #{tpu_custom_call.1} parent=1 // pred_check
      _
    $region39: #{tpu_custom_call.1} parent=1 // pred_check_branch
      %77 = sbr.rel (0) target = $region41
    $region40: #{tpu_custom_call.1} parent=1 // pred_region
      %78 = dma.done [#allocation10], 1024
    $region41: #{tpu_custom_call.1} parent=1 // pred_fallthru
      _
    %p80 = scmp.eq.s32.totalorder 0, 0
    // Predicated region
    $region42: #{tpu_custom_call.1} parent=1 // pred_check
      %p81 = pneg %p80
    $region43: #{tpu_custom_call.1} parent=1 // pred_check_branch
      %83 = sbr.rel (%p81) target = $region45
    $region44: #{tpu_custom_call.1} parent=1 // pred_region
      %84 = vst [vmem:[#allocation2] sm:$0xff] 0.0
      %85 = vst [vmem:[#allocation2 + $0x8] sm:$0xff] 0.0
      %86 = vst [vmem:[#allocation2 + $0x10] sm:$0xff] 0.0
      %87 = vst [vmem:[#allocation2 + $0x18] sm:$0xff] 0.0
      %88 = vst [vmem:[#allocation2 + $0x20] sm:$0xff] 0.0
      %89 = vst [vmem:[#allocation2 + $0x28] sm:$0xff] 0.0
      %90 = vst [vmem:[#allocation2 + $0x30] sm:$0xff] 0.0
      %91 = vst [vmem:[#allocation2 + $0x38] sm:$0xff] 0.0
      %92 = vst [vmem:[#allocation2 + $0x40] sm:$0xff] 0.0
      %93 = vst [vmem:[#allocation2 + $0x48] sm:$0xff] 0.0
      %94 = vst [vmem:[#allocation2 + $0x50] sm:$0xff] 0.0
      %95 = vst [vmem:[#allocation2 + $0x58] sm:$0xff] 0.0
      %96 = vst [vmem:[#allocation2 + $0x60] sm:$0xff] 0.0
      %97 = vst [vmem:[#allocation2 + $0x68] sm:$0xff] 0.0
      %98 = vst [vmem:[#allocation2 + $0x70] sm:$0xff] 0.0
      %99 = vst [vmem:[#allocation2 + $0x78] sm:$0xff] 0.0
      %100 = vst [vmem:[#allocation2 + $0x80] sm:$0xff] 0.0
      %101 = vst [vmem:[#allocation2 + $0x88] sm:$0xff] 0.0
      %102 = vst [vmem:[#allocation2 + $0x90] sm:$0xff] 0.0
      %103 = vst [vmem:[#allocation2 + $0x98] sm:$0xff] 0.0
      %104 = vst [vmem:[#allocation2 + $0xa0] sm:$0xff] 0.0
      %105 = vst [vmem:[#allocation2 + $0xa8] sm:$0xff] 0.0
      %106 = vst [vmem:[#allocation2 + $0xb0] sm:$0xff] 0.0
      %107 = vst [vmem:[#allocation2 + $0xb8] sm:$0xff] 0.0
      %108 = vst [vmem:[#allocation2 + $0xc0] sm:$0xff] 0.0
      %109 = vst [vmem:[#allocation2 + $0xc8] sm:$0xff] 0.0
      %110 = vst [vmem:[#allocation2 + $0xd0] sm:$0xff] 0.0
      %111 = vst [vmem:[#allocation2 + $0xd8] sm:$0xff] 0.0
      %112 = vst [vmem:[#allocation2 + $0xe0] sm:$0xff] 0.0
      %113 = vst [vmem:[#allocation2 + $0xe8] sm:$0xff] 0.0
      %114 = vst [vmem:[#allocation2 + $0xf0] sm:$0xff] 0.0
      %115 = vst [vmem:[#allocation2 + $0xf8] sm:$0xff] 0.0
    $region45: #{tpu_custom_call.1} parent=1 // pred_fallthru
      _
    %s116 = smul.u32 0, 256
    %s117 = sshra.s32 %s116, 3
    %s118 = sand.u32 %s116, 7
    %s119 = smul.addr %s117, 4
    %s120 = scalar_lea.vmem [#allocation6], %s119
    %v121 = vld [vmem:[%s120] sm:$0xf]
    %v122 = vld [vmem:[%s120 + $0x4] sm:$0xf]
    %v123 = vld [vmem:[%s120 + $0x8] sm:$0xf]
    %v124 = vld [vmem:[%s120 + $0xc] sm:$0xf]
    %v125 = vld [vmem:[%s120 + $0x10] sm:$0xf]
    %v126 = vld [vmem:[%s120 + $0x14] sm:$0xf]
    %v127 = vld [vmem:[%s120 + $0x18] sm:$0xf]
    %v128 = vld [vmem:[%s120 + $0x1c] sm:$0xf]
    %v129 = vld [vmem:[%s120 + $0x20] sm:$0xf]
    %v130 = vld [vmem:[%s120 + $0x24] sm:$0xf]
    %v131 = vld [vmem:[%s120 + $0x28] sm:$0xf]
    %v132 = vld [vmem:[%s120 + $0x2c] sm:$0xf]
    %v133 = vld [vmem:[%s120 + $0x30] sm:$0xf]
    %v134 = vld [vmem:[%s120 + $0x34] sm:$0xf]
    %v135 = vld [vmem:[%s120 + $0x38] sm:$0xf]
    %v136 = vld [vmem:[%s120 + $0x3c] sm:$0xf]
    %v137 = vld [vmem:[%s120 + $0x40] sm:$0xf]
    %v138 = vld [vmem:[%s120 + $0x44] sm:$0xf]
    %v139 = vld [vmem:[%s120 + $0x48] sm:$0xf]
    %v140 = vld [vmem:[%s120 + $0x4c] sm:$0xf]
    %v141 = vld [vmem:[%s120 + $0x50] sm:$0xf]
    %v142 = vld [vmem:[%s120 + $0x54] sm:$0xf]
    %v143 = vld [vmem:[%s120 + $0x58] sm:$0xf]
    %v144 = vld [vmem:[%s120 + $0x5c] sm:$0xf]
    %v145 = vld [vmem:[%s120 + $0x60] sm:$0xf]
    %v146 = vld [vmem:[%s120 + $0x64] sm:$0xf]
    %v147 = vld [vmem:[%s120 + $0x68] sm:$0xf]
    %v148 = vld [vmem:[%s120 + $0x6c] sm:$0xf]
    %v149 = vld [vmem:[%s120 + $0x70] sm:$0xf]
    %v150 = vld [vmem:[%s120 + $0x74] sm:$0xf]
    %v151 = vld [vmem:[%s120 + $0x78] sm:$0xf]
    %v152 = vld [vmem:[%s120 + $0x7c] sm:$0xf]
    %v153 = vld [vmem:[#allocation2] sm:$0xff]
    %v154 = vld [vmem:[#allocation2 + $0x8] sm:$0xff]
    %v155 = vld [vmem:[#allocation2 + $0x10] sm:$0xff]
    %v156 = vld [vmem:[#allocation2 + $0x18] sm:$0xff]
    %v157 = vld [vmem:[#allocation2 + $0x20] sm:$0xff]
    %v158 = vld [vmem:[#allocation2 + $0x28] sm:$0xff]
    %v159 = vld [vmem:[#allocation2 + $0x30] sm:$0xff]
    %v160 = vld [vmem:[#allocation2 + $0x38] sm:$0xff]
    %v161 = vld [vmem:[#allocation2 + $0x40] sm:$0xff]
    %v162 = vld [vmem:[#allocation2 + $0x48] sm:$0xff]
    %v163 = vld [vmem:[#allocation2 + $0x50] sm:$0xff]
    %v164 = vld [vmem:[#allocation2 + $0x58] sm:$0xff]
    %v165 = vld [vmem:[#allocation2 + $0x60] sm:$0xff]
    %v166 = vld [vmem:[#allocation2 + $0x68] sm:$0xff]
    %v167 = vld [vmem:[#allocation2 + $0x70] sm:$0xff]
    %v168 = vld [vmem:[#allocation2 + $0x78] sm:$0xff]
    %v169 = vld [vmem:[#allocation2 + $0x80] sm:$0xff]
    %v170 = vld [vmem:[#allocation2 + $0x88] sm:$0xff]
    %v171 = vld [vmem:[#allocation2 + $0x90] sm:$0xff]
    %v172 = vld [vmem:[#allocation2 + $0x98] sm:$0xff]
    %v173 = vld [vmem:[#allocation2 + $0xa0] sm:$0xff]
    %v174 = vld [vmem:[#allocation2 + $0xa8] sm:$0xff]
    %v175 = vld [vmem:[#allocation2 + $0xb0] sm:$0xff]
    %v176 = vld [vmem:[#allocation2 + $0xb8] sm:$0xff]
    %v177 = vld [vmem:[#allocation2 + $0xc0] sm:$0xff]
    %v178 = vld [vmem:[#allocation2 + $0xc8] sm:$0xff]
    %v179 = vld [vmem:[#allocation2 + $0xd0] sm:$0xff]
    %v180 = vld [vmem:[#allocation2 + $0xd8] sm:$0xff]
    %v181 = vld [vmem:[#allocation2 + $0xe0] sm:$0xff]
    %v182 = vld [vmem:[#allocation2 + $0xe8] sm:$0xff]
    %v183 = vld [vmem:[#allocation2 + $0xf0] sm:$0xff]
    %v184 = vld [vmem:[#allocation2 + $0xf8] sm:$0xff]
    %v185 = vld [vmem:[#allocation3] sm:$0xff]
    %v186 = vld [vmem:[#allocation3 + $0x8] sm:$0xff]
    %v187 = vld [vmem:[#allocation3 + $0x10] sm:$0xff]
    %v188 = vld [vmem:[#allocation3 + $0x18] sm:$0xff]
    %v189 = vld [vmem:[#allocation3 + $0x20] sm:$0xff]
    %v190 = vld [vmem:[#allocation3 + $0x28] sm:$0xff]
    %v191 = vld [vmem:[#allocation3 + $0x30] sm:$0xff]
    %v192 = vld [vmem:[#allocation3 + $0x38] sm:$0xff]
    %v193 = vld [vmem:[#allocation3 + $0x40] sm:$0xff]
    %v194 = vld [vmem:[#allocation3 + $0x48] sm:$0xff]
    %v195 = vld [vmem:[#allocation3 + $0x50] sm:$0xff]
    %v196 = vld [vmem:[#allocation3 + $0x58] sm:$0xff]
    %v197 = vld [vmem:[#allocation3 + $0x60] sm:$0xff]
    %v198 = vld [vmem:[#allocation3 + $0x68] sm:$0xff]
    %v199 = vld [vmem:[#allocation3 + $0x70] sm:$0xff]
    %v200 = vld [vmem:[#allocation3 + $0x78] sm:$0xff]
    %v201 = vld [vmem:[#allocation3 + $0x80] sm:$0xff]
    %v202 = vld [vmem:[#allocation3 + $0x88] sm:$0xff]
    %v203 = vld [vmem:[#allocation3 + $0x90] sm:$0xff]
    %v204 = vld [vmem:[#allocation3 + $0x98] sm:$0xff]
    %v205 = vld [vmem:[#allocation3 + $0xa0] sm:$0xff]
    %v206 = vld [vmem:[#allocation3 + $0xa8] sm:$0xff]
    %v207 = vld [vmem:[#allocation3 + $0xb0] sm:$0xff]
    %v208 = vld [vmem:[#allocation3 + $0xb8] sm:$0xff]
    %v209 = vld [vmem:[#allocation3 + $0xc0] sm:$0xff]
    %v210 = vld [vmem:[#allocation3 + $0xc8] sm:$0xff]
    %v211 = vld [vmem:[#allocation3 + $0xd0] sm:$0xff]
    %v212 = vld [vmem:[#allocation3 + $0xd8] sm:$0xff]
    %v213 = vld [vmem:[#allocation3 + $0xe0] sm:$0xff]
    %v214 = vld [vmem:[#allocation3 + $0xe8] sm:$0xff]
    %v215 = vld [vmem:[#allocation3 + $0xf0] sm:$0xff]
    %v216 = vld [vmem:[#allocation3 + $0xf8] sm:$0xff]
    %v249 = vunpack.c.l.b16 %v185
    %v250 = vunpack.c.h.b16 %v185
    %v251 = vunpack.c.l.b16 %v186
    %v252 = vunpack.c.h.b16 %v186
    %v253 = vunpack.c.l.b16 %v187
    %v254 = vunpack.c.h.b16 %v187
    %v255 = vunpack.c.l.b16 %v188
    %v256 = vunpack.c.h.b16 %v188
    %v257 = vunpack.c.l.b16 %v189
    %v258 = vunpack.c.h.b16 %v189
    %v259 = vunpack.c.l.b16 %v190
    %v260 = vunpack.c.h.b16 %v190
    %v261 = vunpack.c.l.b16 %v191
    %v262 = vunpack.c.h.b16 %v191
    %v263 = vunpack.c.l.b16 %v192
    %v264 = vunpack.c.h.b16 %v192
    %v265 = vunpack.c.l.b16 %v193
    %v266 = vunpack.c.h.b16 %v193
    %v267 = vunpack.c.l.b16 %v194
    %v268 = vunpack.c.h.b16 %v194
    %v269 = vunpack.c.l.b16 %v195
    %v270 = vunpack.c.h.b16 %v195
    %v271 = vunpack.c.l.b16 %v196
    %v272 = vunpack.c.h.b16 %v196
    %v273 = vunpack.c.l.b16 %v197
    %v274 = vunpack.c.h.b16 %v197
    %v275 = vunpack.c.l.b16 %v198
    %v276 = vunpack.c.h.b16 %v198
    %v277 = vunpack.c.l.b16 %v199
    %v278 = vunpack.c.h.b16 %v199
    %v279 = vunpack.c.l.b16 %v200
    %v280 = vunpack.c.h.b16 %v200
    %v281 = vunpack.c.l.b16 %v201
    %v282 = vunpack.c.h.b16 %v201
    %v283 = vunpack.c.l.b16 %v202
    %v284 = vunpack.c.h.b16 %v202
    %v285 = vunpack.c.l.b16 %v203
    %v286 = vunpack.c.h.b16 %v203
    %v287 = vunpack.c.l.b16 %v204
    %v288 = vunpack.c.h.b16 %v204
    %v289 = vunpack.c.l.b16 %v205
    %v290 = vunpack.c.h.b16 %v205
    %v291 = vunpack.c.l.b16 %v206
    %v292 = vunpack.c.h.b16 %v206
    %v293 = vunpack.c.l.b16 %v207
    %v294 = vunpack.c.h.b16 %v207
    %v295 = vunpack.c.l.b16 %v208
    %v296 = vunpack.c.h.b16 %v208
    %v297 = vunpack.c.l.b16 %v209
    %v298 = vunpack.c.h.b16 %v209
    %v299 = vunpack.c.l.b16 %v210
    %v300 = vunpack.c.h.b16 %v210
    %v301 = vunpack.c.l.b16 %v211
    %v302 = vunpack.c.h.b16 %v211
    %v303 = vunpack.c.l.b16 %v212
    %v304 = vunpack.c.h.b16 %v212
    %v305 = vunpack.c.l.b16 %v213
    %v306 = vunpack.c.h.b16 %v213
    %v307 = vunpack.c.l.b16 %v214
    %v308 = vunpack.c.h.b16 %v214
    %v309 = vunpack.c.l.b16 %v215
    %v310 = vunpack.c.h.b16 %v215
    %v311 = vunpack.c.l.b16 %v216
    %v312 = vunpack.c.h.b16 %v216
    %v313 = vpack.c.b16 %v251, %v249
    %v314 = vpack.c.b16 %v252, %v250
    %v315 = vpack.c.b16 %v255, %v253
    %v316 = vpack.c.b16 %v256, %v254
    %v317 = vpack.c.b16 %v259, %v257
    %v318 = vpack.c.b16 %v260, %v258
    %v319 = vpack.c.b16 %v263, %v261
    %v320 = vpack.c.b16 %v264, %v262
    %v321 = vpack.c.b16 %v267, %v265
    %v322 = vpack.c.b16 %v268, %v266
    %v323 = vpack.c.b16 %v271, %v269
    %v324 = vpack.c.b16 %v272, %v270
    %v325 = vpack.c.b16 %v275, %v273
    %v326 = vpack.c.b16 %v276, %v274
    %v327 = vpack.c.b16 %v279, %v277
    %v328 = vpack.c.b16 %v280, %v278
    %v329 = vpack.c.b16 %v283, %v281
    %v330 = vpack.c.b16 %v284, %v282
    %v331 = vpack.c.b16 %v287, %v285
    %v332 = vpack.c.b16 %v288, %v286
    %v333 = vpack.c.b16 %v291, %v289
    %v334 = vpack.c.b16 %v292, %v290
    %v335 = vpack.c.b16 %v295, %v293
    %v336 = vpack.c.b16 %v296, %v294
    %v337 = vpack.c.b16 %v299, %v297
    %v338 = vpack.c.b16 %v300, %v298
    %v339 = vpack.c.b16 %v303, %v301
    %v340 = vpack.c.b16 %v304, %v302
    %v341 = vpack.c.b16 %v307, %v305
    %v342 = vpack.c.b16 %v308, %v306
    %v343 = vpack.c.b16 %v311, %v309
    %v344 = vpack.c.b16 %v312, %v310
    %v409 = vunpack.c.l.b16 %v121
    %v410 = vunpack.c.l.b16 %v122
    %v411 = vunpack.c.l.b16 %v123
    %v412 = vunpack.c.l.b16 %v124
    %v413 = vunpack.c.l.b16 %v125
    %v414 = vunpack.c.l.b16 %v126
    %v415 = vunpack.c.l.b16 %v127
    %v416 = vunpack.c.l.b16 %v128
    %v417 = vunpack.c.l.b16 %v129
    %v418 = vunpack.c.l.b16 %v130
    %v419 = vunpack.c.l.b16 %v131
    %v420 = vunpack.c.l.b16 %v132
    %v421 = vunpack.c.l.b16 %v133
    %v422 = vunpack.c.l.b16 %v134
    %v423 = vunpack.c.l.b16 %v135
    %v424 = vunpack.c.l.b16 %v136
    %v425 = vunpack.c.l.b16 %v137
    %v426 = vunpack.c.l.b16 %v138
    %v427 = vunpack.c.l.b16 %v139
    %v428 = vunpack.c.l.b16 %v140
    %v429 = vunpack.c.l.b16 %v141
    %v430 = vunpack.c.l.b16 %v142
    %v431 = vunpack.c.l.b16 %v143
    %v432 = vunpack.c.l.b16 %v144
    %v433 = vunpack.c.l.b16 %v145
    %v434 = vunpack.c.l.b16 %v146
    %v435 = vunpack.c.l.b16 %v147
    %v436 = vunpack.c.l.b16 %v148
    %v437 = vunpack.c.l.b16 %v149
    %v438 = vunpack.c.l.b16 %v150
    %v439 = vunpack.c.l.b16 %v151
    %v440 = vunpack.c.l.b16 %v152
    %v441 = vpack.c.b16 %v410, %v409
    %v442 = vpack.c.b16 %v412, %v411
    %v443 = vpack.c.b16 %v414, %v413
    %v444 = vpack.c.b16 %v416, %v415
    %v445 = vpack.c.b16 %v418, %v417
    %v446 = vpack.c.b16 %v420, %v419
    %v447 = vpack.c.b16 %v422, %v421
    %v448 = vpack.c.b16 %v424, %v423
    %v449 = vpack.c.b16 %v426, %v425
    %v450 = vpack.c.b16 %v428, %v427
    %v451 = vpack.c.b16 %v430, %v429
    %v452 = vpack.c.b16 %v432, %v431
    %v453 = vpack.c.b16 %v434, %v433
    %v454 = vpack.c.b16 %v436, %v435
    %v455 = vpack.c.b16 %v438, %v437
    %v456 = vpack.c.b16 %v440, %v439
    %473 = vmatprep.subr.bf16.mxu0 0
    %474 = vmatpush1.bf16.msra.mxu0 %v441
    %475 = vmatprep.subr.bf16.mxu0 0
    %476 = vmatpush1.bf16.msra.mxu0 %v442
    %477 = vmatprep.subr.bf16.mxu0 0
    %478 = vmatpush1.bf16.msra.mxu0 %v443
    %479 = vmatprep.subr.bf16.mxu0 0
    %480 = vmatpush1.bf16.msra.mxu0 %v444
    %481 = vmatprep.subr.bf16.mxu0 0
    %482 = vmatpush1.bf16.msra.mxu0 %v445
    %483 = vmatprep.subr.bf16.mxu0 0
    %484 = vmatpush1.bf16.msra.mxu0 %v446
    %485 = vmatprep.subr.bf16.mxu0 0
    %486 = vmatpush1.bf16.msra.mxu0 %v447
    %487 = vmatprep.subr.bf16.mxu0 0
    %488 = vmatpush1.bf16.msra.mxu0 %v448
    %489 = vmatprep.subr.bf16.mxu0 0
    %490 = vmatpush1.bf16.msra.mxu0 %v449
    %491 = vmatprep.subr.bf16.mxu0 0
    %492 = vmatpush1.bf16.msra.mxu0 %v450
    %493 = vmatprep.subr.bf16.mxu0 0
    %494 = vmatpush1.bf16.msra.mxu0 %v451
    %495 = vmatprep.subr.bf16.mxu0 0
    %496 = vmatpush1.bf16.msra.mxu0 %v452
    %497 = vmatprep.subr.bf16.mxu0 0
    %498 = vmatpush1.bf16.msra.mxu0 %v453
    %499 = vmatprep.subr.bf16.mxu0 0
    %500 = vmatpush1.bf16.msra.mxu0 %v454
    %501 = vmatprep.subr.bf16.mxu0 0
    %502 = vmatpush1.bf16.msra.mxu0 %v455
    %503 = vmatprep.subr.bf16.mxu0 0
    %504 = vmatpush1.bf16.msra.mxu0 %v456
    %505 = vmatprep.mubr.bf16.mxu0 %v314
    %506 = vmatmul.mubr.bf16.gmra.mrb[0].mxu0 %v313
    %v507 = vpop.f32.mrb[0].mxu0
    %v508 = vadd.f32 0.0, %v507
    %v509 = vpop.f32.mrb[0].mxu0
    %v510 = vpop.f32.mrb[0].mxu0
    %v511 = vadd.f32 0.0, %v510
    %v512 = vpop.f32.mrb[0].mxu0
    %513 = vmatprep.mubr.bf16.mxu0 %v316
    %514 = vmatmul.mubr.bf16.gmra.mrb[0].mxu0 %v315
    %v515 = vpop.f32.mrb[0].mxu0
    %v516 = vadd.f32 0.0, %v515
    %v517 = vpop.f32.mrb[0].mxu0
    %v518 = vpop.f32.mrb[0].mxu0
    %v519 = vadd.f32 0.0, %v518
    %v520 = vpop.f32.mrb[0].mxu0
    %521 = vmatprep.mubr.bf16.mxu0 %v318
    %522 = vmatmul.mubr.bf16.gmra.mrb[0].mxu0 %v317
    %v523 = vpop.f32.mrb[0].mxu0
    %v524 = vadd.f32 0.0, %v523
    %v525 = vpop.f32.mrb[0].mxu0
    %v526 = vpop.f32.mrb[0].mxu0
    %v527 = vadd.f32 0.0, %v526
    %v528 = vpop.f32.mrb[0].mxu0
    %529 = vmatprep.mubr.bf16.mxu0 %v320
    %530 = vmatmul.mubr.bf16.gmra.mrb[0].mxu0 %v319
    %v531 = vpop.f32.mrb[0].mxu0
    %v532 = vadd.f32 0.0, %v531
    %v533 = vpop.f32.mrb[0].mxu0
    %v534 = vpop.f32.mrb[0].mxu0
    %v535 = vadd.f32 0.0, %v534
    %v536 = vpop.f32.mrb[0].mxu0
    %537 = vmatprep.mubr.bf16.mxu0 %v322
    %538 = vmatmul.mubr.bf16.gmra.mrb[0].mxu0 %v321
    %v539 = vpop.f32.mrb[0].mxu0
    %v540 = vadd.f32 0.0, %v539
    %v541 = vpop.f32.mrb[0].mxu0
    %v542 = vpop.f32.mrb[0].mxu0
    %v543 = vadd.f32 0.0, %v542
    %v544 = vpop.f32.mrb[0].mxu0
    %545 = vmatprep.mubr.bf16.mxu0 %v324
    %546 = vmatmul.mubr.bf16.gmra.mrb[0].mxu0 %v323
    %v547 = vpop.f32.mrb[0].mxu0
    %v548 = vadd.f32 0.0, %v547
    %v549 = vpop.f32.mrb[0].mxu0
    %v550 = vpop.f32.mrb[0].mxu0
    %v551 = vadd.f32 0.0, %v550
    %v552 = vpop.f32.mrb[0].mxu0
    %553 = vmatprep.mubr.bf16.mxu0 %v326
    %554 = vmatmul.mubr.bf16.gmra.mrb[0].mxu0 %v325
    %v555 = vpop.f32.mrb[0].mxu0
    %v556 = vadd.f32 0.0, %v555
    %v557 = vpop.f32.mrb[0].mxu0
    %v558 = vpop.f32.mrb[0].mxu0
    %v559 = vadd.f32 0.0, %v558
    %v560 = vpop.f32.mrb[0].mxu0
    %561 = vmatprep.mubr.bf16.mxu0 %v328
    %562 = vmatmul.mubr.bf16.gmra.mrb[0].mxu0 %v327
    %v563 = vpop.f32.mrb[0].mxu0
    %v564 = vadd.f32 0.0, %v563
    %v565 = vpop.f32.mrb[0].mxu0
    %v566 = vpop.f32.mrb[0].mxu0
    %v567 = vadd.f32 0.0, %v566
    %v568 = vpop.f32.mrb[0].mxu0
    %569 = vmatprep.mubr.bf16.mxu0 %v330
    %570 = vmatmul.mubr.bf16.gmra.mrb[0].mxu0 %v329
    %v571 = vpop.f32.mrb[0].mxu0
    %v572 = vadd.f32 0.0, %v571
    %v573 = vpop.f32.mrb[0].mxu0
    %v574 = vpop.f32.mrb[0].mxu0
    %v575 = vadd.f32 0.0, %v574
    %v576 = vpop.f32.mrb[0].mxu0
    %577 = vmatprep.mubr.bf16.mxu0 %v332
    %578 = vmatmul.mubr.bf16.gmra.mrb[0].mxu0 %v331
    %v579 = vpop.f32.mrb[0].mxu0
    %v580 = vadd.f32 0.0, %v579
    %v581 = vpop.f32.mrb[0].mxu0
    %v582 = vpop.f32.mrb[0].mxu0
    %v583 = vadd.f32 0.0, %v582
    %v584 = vpop.f32.mrb[0].mxu0
    %585 = vmatprep.mubr.bf16.mxu0 %v334
    %586 = vmatmul.mubr.bf16.gmra.mrb[0].mxu0 %v333
    %v587 = vpop.f32.mrb[0].mxu0
    %v588 = vadd.f32 0.0, %v587
    %v589 = vpop.f32.mrb[0].mxu0
    %v590 = vpop.f32.mrb[0].mxu0
    %v591 = vadd.f32 0.0, %v590
    %v592 = vpop.f32.mrb[0].mxu0
    %593 = vmatprep.mubr.bf16.mxu0 %v336
    %594 = vmatmul.mubr.bf16.gmra.mrb[0].mxu0 %v335
    %v595 = vpop.f32.mrb[0].mxu0
    %v596 = vadd.f32 0.0, %v595
    %v597 = vpop.f32.mrb[0].mxu0
    %v598 = vpop.f32.mrb[0].mxu0
    %v599 = vadd.f32 0.0, %v598
    %v600 = vpop.f32.mrb[0].mxu0
    %601 = vmatprep.mubr.bf16.mxu0 %v338
    %602 = vmatmul.mubr.bf16.gmra.mrb[0].mxu0 %v337
    %v603 = vpop.f32.mrb[0].mxu0
    %v604 = vadd.f32 0.0, %v603
    %v605 = vpop.f32.mrb[0].mxu0
    %v606 = vpop.f32.mrb[0].mxu0
    %v607 = vadd.f32 0.0, %v606
    %v608 = vpop.f32.mrb[0].mxu0
    %609 = vmatprep.mubr.bf16.mxu0 %v340
    %610 = vmatmul.mubr.bf16.gmra.mrb[0].mxu0 %v339
    %v611 = vpop.f32.mrb[0].mxu0
    %v612 = vadd.f32 0.0, %v611
    %v613 = vpop.f32.mrb[0].mxu0
    %v614 = vpop.f32.mrb[0].mxu0
    %v615 = vadd.f32 0.0, %v614
    %v616 = vpop.f32.mrb[0].mxu0
    %617 = vmatprep.mubr.bf16.mxu0 %v342
    %618 = vmatmul.mubr.bf16.gmra.mrb[0].mxu0 %v341
    %v619 = vpop.f32.mrb[0].mxu0
    %v620 = vadd.f32 0.0, %v619
    %v621 = vpop.f32.mrb[0].mxu0
    %v622 = vpop.f32.mrb[0].mxu0
    %v623 = vadd.f32 0.0, %v622
    %v624 = vpop.f32.mrb[0].mxu0
    %625 = vmatprep.mubr.bf16.mxu0 %v344
    %626 = vmatmul.mubr.bf16.gmra.mrb[0].mxu0 %v343
    %v627 = vpop.f32.mrb[0].mxu0
    %v628 = vadd.f32 0.0, %v627
    %v629 = vpop.f32.mrb[0].mxu0
    %v630 = vpop.f32.mrb[0].mxu0
    %v631 = vadd.f32 0.0, %v630
    %v632 = vpop.f32.mrb[0].mxu0
    %633 = vdwg.mxu0
    %v634 = vadd.f32 %v153, %v508
    %v635 = vadd.f32 %v154, %v511
    %v636 = vadd.f32 %v155, %v516
    %v637 = vadd.f32 %v156, %v519
    %v638 = vadd.f32 %v157, %v524
    %v639 = vadd.f32 %v158, %v527
    %v640 = vadd.f32 %v159, %v532
    %v641 = vadd.f32 %v160, %v535
    %v642 = vadd.f32 %v161, %v540
    %v643 = vadd.f32 %v162, %v543
    %v644 = vadd.f32 %v163, %v548
    %v645 = vadd.f32 %v164, %v551
    %v646 = vadd.f32 %v165, %v556
    %v647 = vadd.f32 %v166, %v559
    %v648 = vadd.f32 %v167, %v564
    %v649 = vadd.f32 %v168, %v567
    %v650 = vadd.f32 %v169, %v572
    %v651 = vadd.f32 %v170, %v575
    %v652 = vadd.f32 %v171, %v580
    %v653 = vadd.f32 %v172, %v583
    %v654 = vadd.f32 %v173, %v588
    %v655 = vadd.f32 %v174, %v591
    %v656 = vadd.f32 %v175, %v596
    %v657 = vadd.f32 %v176, %v599
    %v658 = vadd.f32 %v177, %v604
    %v659 = vadd.f32 %v178, %v607
    %v660 = vadd.f32 %v179, %v612
    %v661 = vadd.f32 %v180, %v615
    %v662 = vadd.f32 %v181, %v620
    %v663 = vadd.f32 %v182, %v623
    %v664 = vadd.f32 %v183, %v628
    %v665 = vadd.f32 %v184, %v631
    %666 = vst [vmem:[#allocation2] sm:$0xff] %v634
    %667 = vst [vmem:[#allocation2 + $0x8] sm:$0xff] %v635
    %668 = vst [vmem:[#allocation2 + $0x10] sm:$0xff] %v636
    %669 = vst [vmem:[#allocation2 + $0x18] sm:$0xff] %v637
    %670 = vst [vmem:[#allocation2 + $0x20] sm:$0xff] %v638
    %671 = vst [vmem:[#allocation2 + $0x28] sm:$0xff] %v639
    %672 = vst [vmem:[#allocation2 + $0x30] sm:$0xff] %v640
    %673 = vst [vmem:[#allocation2 + $0x38] sm:$0xff] %v641
    %674 = vst [vmem:[#allocation2 + $0x40] sm:$0xff] %v642
    %675 = vst [vmem:[#allocation2 + $0x48] sm:$0xff] %v643
    %676 = vst [vmem:[#allocation2 + $0x50] sm:$0xff] %v644
    %677 = vst [vmem:[#allocation2 + $0x58] sm:$0xff] %v645
    %678 = vst [vmem:[#allocation2 + $0x60] sm:$0xff] %v646
    %679 = vst [vmem:[#allocation2 + $0x68] sm:$0xff] %v647
    %680 = vst [vmem:[#allocation2 + $0x70] sm:$0xff] %v648
    %681 = vst [vmem:[#allocation2 + $0x78] sm:$0xff] %v649
    %682 = vst [vmem:[#allocation2 + $0x80] sm:$0xff] %v650
    %683 = vst [vmem:[#allocation2 + $0x88] sm:$0xff] %v651
    %684 = vst [vmem:[#allocation2 + $0x90] sm:$0xff] %v652
    %685 = vst [vmem:[#allocation2 + $0x98] sm:$0xff] %v653
    %686 = vst [vmem:[#allocation2 + $0xa0] sm:$0xff] %v654
    %687 = vst [vmem:[#allocation2 + $0xa8] sm:$0xff] %v655
    %688 = vst [vmem:[#allocation2 + $0xb0] sm:$0xff] %v656
    %689 = vst [vmem:[#allocation2 + $0xb8] sm:$0xff] %v657
    %690 = vst [vmem:[#allocation2 + $0xc0] sm:$0xff] %v658
    %691 = vst [vmem:[#allocation2 + $0xc8] sm:$0xff] %v659
    %692 = vst [vmem:[#allocation2 + $0xd0] sm:$0xff] %v660
    %693 = vst [vmem:[#allocation2 + $0xd8] sm:$0xff] %v661
    %694 = vst [vmem:[#allocation2 + $0xe0] sm:$0xff] %v662
    %695 = vst [vmem:[#allocation2 + $0xe8] sm:$0xff] %v663
    %696 = vst [vmem:[#allocation2 + $0xf0] sm:$0xff] %v664
    %697 = vst [vmem:[#allocation2 + $0xf8] sm:$0xff] %v665
    // Predicated region
    $region46: #{tpu_custom_call.1} parent=1 // pred_check
      %p698 = pneg %p80
    $region47: #{tpu_custom_call.1} parent=1 // pred_check_branch
      %700 = sbr.rel (%p698) target = $region49
    $region48: #{tpu_custom_call.1} parent=1 // pred_region
      %v701 = vld [vmem:[#allocation2] sm:$0xff]
      %v702 = vld [vmem:[#allocation2 + $0x8] sm:$0xff]
      %v703 = vld [vmem:[#allocation2 + $0x10] sm:$0xff]
      %v704 = vld [vmem:[#allocation2 + $0x18] sm:$0xff]
      %v705 = vld [vmem:[#allocation2 + $0x20] sm:$0xff]
      %v706 = vld [vmem:[#allocation2 + $0x28] sm:$0xff]
      %v707 = vld [vmem:[#allocation2 + $0x30] sm:$0xff]
      %v708 = vld [vmem:[#allocation2 + $0x38] sm:$0xff]
      %v709 = vld [vmem:[#allocation2 + $0x40] sm:$0xff]
      %v710 = vld [vmem:[#allocation2 + $0x48] sm:$0xff]
      %v711 = vld [vmem:[#allocation2 + $0x50] sm:$0xff]
      %v712 = vld [vmem:[#allocation2 + $0x58] sm:$0xff]
      %v713 = vld [vmem:[#allocation2 + $0x60] sm:$0xff]
      %v714 = vld [vmem:[#allocation2 + $0x68] sm:$0xff]
      %v715 = vld [vmem:[#allocation2 + $0x70] sm:$0xff]
      %v716 = vld [vmem:[#allocation2 + $0x78] sm:$0xff]
      %v717 = vld [vmem:[#allocation2 + $0x80] sm:$0xff]
      %v718 = vld [vmem:[#allocation2 + $0x88] sm:$0xff]
      %v719 = vld [vmem:[#allocation2 + $0x90] sm:$0xff]
      %v720 = vld [vmem:[#allocation2 + $0x98] sm:$0xff]
      %v721 = vld [vmem:[#allocation2 + $0xa0] sm:$0xff]
      %v722 = vld [vmem:[#allocation2 + $0xa8] sm:$0xff]
      %v723 = vld [vmem:[#allocation2 + $0xb0] sm:$0xff]
      %v724 = vld [vmem:[#allocation2 + $0xb8] sm:$0xff]
      %v725 = vld [vmem:[#allocation2 + $0xc0] sm:$0xff]
      %v726 = vld [vmem:[#allocation2 + $0xc8] sm:$0xff]
      %v727 = vld [vmem:[#allocation2 + $0xd0] sm:$0xff]
      %v728 = vld [vmem:[#allocation2 + $0xd8] sm:$0xff]
      %v729 = vld [vmem:[#allocation2 + $0xe0] sm:$0xff]
      %v730 = vld [vmem:[#allocation2 + $0xe8] sm:$0xff]
      %v731 = vld [vmem:[#allocation2 + $0xf0] sm:$0xff]
      %v732 = vld [vmem:[#allocation2 + $0xf8] sm:$0xff]
      %v733 = vpack.c.bf16 %v702, %v701
      %v734 = vpack.c.bf16 %v704, %v703
      %v735 = vpack.c.bf16 %v706, %v705
      %v736 = vpack.c.bf16 %v708, %v707
      %v737 = vpack.c.bf16 %v710, %v709
      %v738 = vpack.c.bf16 %v712, %v711
      %v739 = vpack.c.bf16 %v714, %v713
      %v740 = vpack.c.bf16 %v716, %v715
      %v741 = vpack.c.bf16 %v718, %v717
      %v742 = vpack.c.bf16 %v720, %v719
      %v743 = vpack.c.bf16 %v722, %v721
      %v744 = vpack.c.bf16 %v724, %v723
      %v745 = vpack.c.bf16 %v726, %v725
      %v746 = vpack.c.bf16 %v728, %v727
      %v747 = vpack.c.bf16 %v730, %v729
      %v748 = vpack.c.bf16 %v732, %v731
      %v749 = vld [vmem:[#allocation8] sm:$0xf]
      %v750 = vld [vmem:[#allocation8 + $0x4] sm:$0xf]
      %v751 = vld [vmem:[#allocation8 + $0x8] sm:$0xf]
      %v752 = vld [vmem:[#allocation8 + $0xc] sm:$0xf]
      %v753 = vld [vmem:[#allocation8 + $0x10] sm:$0xf]
      %v754 = vld [vmem:[#allocation8 + $0x14] sm:$0xf]
      %v755 = vld [vmem:[#allocation8 + $0x18] sm:$0xf]
      %v756 = vld [vmem:[#allocation8 + $0x1c] sm:$0xf]
      %v757 = vld [vmem:[#allocation8 + $0x20] sm:$0xf]
      %v758 = vld [vmem:[#allocation8 + $0x24] sm:$0xf]
      %v759 = vld [vmem:[#allocation8 + $0x28] sm:$0xf]
      %v760 = vld [vmem:[#allocation8 + $0x2c] sm:$0xf]
      %v761 = vld [vmem:[#allocation8 + $0x30] sm:$0xf]
      %v762 = vld [vmem:[#allocation8 + $0x34] sm:$0xf]
      %v763 = vld [vmem:[#allocation8 + $0x38] sm:$0xf]
      %v764 = vld [vmem:[#allocation8 + $0x3c] sm:$0xf]
      %v765 = vld [vmem:[%s3] sm:$0x1]
      %v767 = vlaneseq
      %v768 = vshrl.u32 %v767, 7
      %v769 = vsub.s32 0, %v768
      %v770 = vrot.slane %v765, %v769
      %v788 = vunpack.c.l.b16 %v749
      %v789 = vunpack.c.l.b16 %v750
      %v790 = vunpack.c.l.b16 %v751
      %v791 = vunpack.c.l.b16 %v752
      %v792 = vunpack.c.l.b16 %v753
      %v793 = vunpack.c.l.b16 %v754
      %v794 = vunpack.c.l.b16 %v755
      %v795 = vunpack.c.l.b16 %v756
      %v796 = vunpack.c.l.b16 %v757
      %v797 = vunpack.c.l.b16 %v758
      %v798 = vunpack.c.l.b16 %v759
      %v799 = vunpack.c.l.b16 %v760
      %v800 = vunpack.c.l.b16 %v761
      %v801 = vunpack.c.l.b16 %v762
      %v802 = vunpack.c.l.b16 %v763
      %v803 = vunpack.c.l.b16 %v764
      %v804 = vpack.c.b16 %v789, %v788
      %v805 = vpack.c.b16 %v791, %v790
      %v806 = vpack.c.b16 %v793, %v792
      %v807 = vpack.c.b16 %v795, %v794
      %v808 = vpack.c.b16 %v797, %v796
      %v809 = vpack.c.b16 %v799, %v798
      %v810 = vpack.c.b16 %v801, %v800
      %v811 = vpack.c.b16 %v803, %v802
      %820 = vmatprep.subr.bf16.mxu0 0
      %821 = vmatpush1.bf16.msra.mxu0 %v804
      %822 = vmatprep.subr.bf16.mxu0 0
      %823 = vmatpush1.bf16.msra.mxu0 %v805
      %824 = vmatprep.subr.bf16.mxu0 0
      %825 = vmatpush1.bf16.msra.mxu0 %v806
      %826 = vmatprep.subr.bf16.mxu0 0
      %827 = vmatpush1.bf16.msra.mxu0 %v807
      %828 = vmatprep.subr.bf16.mxu0 0
      %829 = vmatpush1.bf16.msra.mxu0 %v808
      %830 = vmatprep.subr.bf16.mxu0 0
      %831 = vmatpush1.bf16.msra.mxu0 %v809
      %832 = vmatprep.subr.bf16.mxu0 0
      %833 = vmatpush1.bf16.msra.mxu0 %v810
      %834 = vmatprep.subr.bf16.mxu0 0
      %835 = vmatpush1.bf16.msra.mxu0 %v811
      %836 = vmatprep.subr.bf16.mxu0 0
      %837 = vmatpush1.bf16.msra.mxu0 0
      %838 = vmatprep.subr.bf16.mxu0 0
      %839 = vmatpush1.bf16.msra.mxu0 0
      %840 = vmatprep.subr.bf16.mxu0 0
      %841 = vmatpush1.bf16.msra.mxu0 0
      %842 = vmatprep.subr.bf16.mxu0 0
      %843 = vmatpush1.bf16.msra.mxu0 0
      %844 = vmatprep.subr.bf16.mxu0 0
      %845 = vmatpush1.bf16.msra.mxu0 0
      %846 = vmatprep.subr.bf16.mxu0 0
      %847 = vmatpush1.bf16.msra.mxu0 0
      %848 = vmatprep.subr.bf16.mxu0 0
      %849 = vmatpush1.bf16.msra.mxu0 0
      %850 = vmatprep.subr.bf16.mxu0 0
      %851 = vmatpush1.bf16.msra.mxu0 0
      %852 = vmatprep.mubr.bf16.mxu0 0
      %853 = vmatmul.mubr.bf16.gmra.mrb[0].mxu0 %v733
      %v854 = vpop.f32.mrb[0].mxu0
      %v855 = vadd.f32 %v770, %v854
      %v856 = vpop.f32.mrb[0].mxu0
      %v857 = vpop.f32.mrb[0].mxu0
      %v858 = vadd.f32 %v770, %v857
      %v859 = vpop.f32.mrb[0].mxu0
      %860 = vmatprep.mubr.bf16.mxu0 0
      %861 = vmatmul.mubr.bf16.gmra.mrb[0].mxu0 %v734
      %v862 = vpop.f32.mrb[0].mxu0
      %v863 = vadd.f32 %v770, %v862
      %v864 = vpop.f32.mrb[0].mxu0
      %v865 = vpop.f32.mrb[0].mxu0
      %v866 = vadd.f32 %v770, %v865
      %v867 = vpop.f32.mrb[0].mxu0
      %868 = vmatprep.mubr.bf16.mxu0 0
      %869 = vmatmul.mubr.bf16.gmra.mrb[0].mxu0 %v735
      %v870 = vpop.f32.mrb[0].mxu0
      %v871 = vadd.f32 %v770, %v870
      %v872 = vpop.f32.mrb[0].mxu0
      %v873 = vpop.f32.mrb[0].mxu0
      %v874 = vadd.f32 %v770, %v873
      %v875 = vpop.f32.mrb[0].mxu0
      %876 = vmatprep.mubr.bf16.mxu0 0
      %877 = vmatmul.mubr.bf16.gmra.mrb[0].mxu0 %v736
      %v878 = vpop.f32.mrb[0].mxu0
      %v879 = vadd.f32 %v770, %v878
      %v880 = vpop.f32.mrb[0].mxu0
      %v881 = vpop.f32.mrb[0].mxu0
      %v882 = vadd.f32 %v770, %v881
      %v883 = vpop.f32.mrb[0].mxu0
      %884 = vmatprep.mubr.bf16.mxu0 0
      %885 = vmatmul.mubr.bf16.gmra.mrb[0].mxu0 %v737
      %v886 = vpop.f32.mrb[0].mxu0
      %v887 = vadd.f32 %v770, %v886
      %v888 = vpop.f32.mrb[0].mxu0
      %v889 = vpop.f32.mrb[0].mxu0
      %v890 = vadd.f32 %v770, %v889
      %v891 = vpop.f32.mrb[0].mxu0
      %892 = vmatprep.mubr.bf16.mxu0 0
      %893 = vmatmul.mubr.bf16.gmra.mrb[0].mxu0 %v738
      %v894 = vpop.f32.mrb[0].mxu0
      %v895 = vadd.f32 %v770, %v894
      %v896 = vpop.f32.mrb[0].mxu0
      %v897 = vpop.f32.mrb[0].mxu0
      %v898 = vadd.f32 %v770, %v897
      %v899 = vpop.f32.mrb[0].mxu0
      %900 = vmatprep.mubr.bf16.mxu0 0
      %901 = vmatmul.mubr.bf16.gmra.mrb[0].mxu0 %v739
      %v902 = vpop.f32.mrb[0].mxu0
      %v903 = vadd.f32 %v770, %v902
      %v904 = vpop.f32.mrb[0].mxu0
      %v905 = vpop.f32.mrb[0].mxu0
      %v906 = vadd.f32 %v770, %v905
      %v907 = vpop.f32.mrb[0].mxu0
      %908 = vmatprep.mubr.bf16.mxu0 0
      %909 = vmatmul.mubr.bf16.gmra.mrb[0].mxu0 %v740
      %v910 = vpop.f32.mrb[0].mxu0
      %v911 = vadd.f32 %v770, %v910
      %v912 = vpop.f32.mrb[0].mxu0
      %v913 = vpop.f32.mrb[0].mxu0
      %v914 = vadd.f32 %v770, %v913
      %v915 = vpop.f32.mrb[0].mxu0
      %916 = vmatprep.mubr.bf16.mxu0 0
      %917 = vmatmul.mubr.bf16.gmra.mrb[0].mxu0 %v741
      %v918 = vpop.f32.mrb[0].mxu0
      %v919 = vadd.f32 %v770, %v918
      %v920 = vpop.f32.mrb[0].mxu0
      %v921 = vpop.f32.mrb[0].mxu0
      %v922 = vadd.f32 %v770, %v921
      %v923 = vpop.f32.mrb[0].mxu0
      %924 = vmatprep.mubr.bf16.mxu0 0
      %925 = vmatmul.mubr.bf16.gmra.mrb[0].mxu0 %v742
      %v926 = vpop.f32.mrb[0].mxu0
      %v927 = vadd.f32 %v770, %v926
      %v928 = vpop.f32.mrb[0].mxu0
      %v929 = vpop.f32.mrb[0].mxu0
      %v930 = vadd.f32 %v770, %v929
      %v931 = vpop.f32.mrb[0].mxu0
      %932 = vmatprep.mubr.bf16.mxu0 0
      %933 = vmatmul.mubr.bf16.gmra.mrb[0].mxu0 %v743
      %v934 = vpop.f32.mrb[0].mxu0
      %v935 = vadd.f32 %v770, %v934
      %v936 = vpop.f32.mrb[0].mxu0
      %v937 = vpop.f32.mrb[0].mxu0
      %v938 = vadd.f32 %v770, %v937
      %v939 = vpop.f32.mrb[0].mxu0
      %940 = vmatprep.mubr.bf16.mxu0 0
      %941 = vmatmul.mubr.bf16.gmra.mrb[0].mxu0 %v744
      %v942 = vpop.f32.mrb[0].mxu0
      %v943 = vadd.f32 %v770, %v942
      %v944 = vpop.f32.mrb[0].mxu0
      %v945 = vpop.f32.mrb[0].mxu0
      %v946 = vadd.f32 %v770, %v945
      %v947 = vpop.f32.mrb[0].mxu0
      %948 = vmatprep.mubr.bf16.mxu0 0
      %949 = vmatmul.mubr.bf16.gmra.mrb[0].mxu0 %v745
      %v950 = vpop.f32.mrb[0].mxu0
      %v951 = vadd.f32 %v770, %v950
      %v952 = vpop.f32.mrb[0].mxu0
      %v953 = vpop.f32.mrb[0].mxu0
      %v954 = vadd.f32 %v770, %v953
      %v955 = vpop.f32.mrb[0].mxu0
      %956 = vmatprep.mubr.bf16.mxu0 0
      %957 = vmatmul.mubr.bf16.gmra.mrb[0].mxu0 %v746
      %v958 = vpop.f32.mrb[0].mxu0
      %v959 = vadd.f32 %v770, %v958
      %v960 = vpop.f32.mrb[0].mxu0
      %v961 = vpop.f32.mrb[0].mxu0
      %v962 = vadd.f32 %v770, %v961
      %v963 = vpop.f32.mrb[0].mxu0
      %964 = vmatprep.mubr.bf16.mxu0 0
      %965 = vmatmul.mubr.bf16.gmra.mrb[0].mxu0 %v747
      %v966 = vpop.f32.mrb[0].mxu0
      %v967 = vadd.f32 %v770, %v966
      %v968 = vpop.f32.mrb[0].mxu0
      %v969 = vpop.f32.mrb[0].mxu0
      %v970 = vadd.f32 %v770, %v969
      %v971 = vpop.f32.mrb[0].mxu0
      %972 = vmatprep.mubr.bf16.mxu0 0
      %973 = vmatmul.mubr.bf16.gmra.mrb[0].mxu0 %v748
      %v974 = vpop.f32.mrb[0].mxu0
      %v975 = vadd.f32 %v770, %v974
      %v976 = vpop.f32.mrb[0].mxu0
      %v977 = vpop.f32.mrb[0].mxu0
      %v978 = vadd.f32 %v770, %v977
      %v979 = vpop.f32.mrb[0].mxu0
      %980 = vdwg.mxu0
      %v981 = vmax.f32 %v855, 0.0
      %v982 = vmax.f32 %v858, 0.0
      %v983 = vmax.f32 %v863, 0.0
      %v984 = vmax.f32 %v866, 0.0
      %v985 = vmax.f32 %v871, 0.0
      %v986 = vmax.f32 %v874, 0.0
      %v987 = vmax.f32 %v879, 0.0
      %v988 = vmax.f32 %v882, 0.0
      %v989 = vmax.f32 %v887, 0.0
      %v990 = vmax.f32 %v890, 0.0
      %v991 = vmax.f32 %v895, 0.0
      %v992 = vmax.f32 %v898, 0.0
      %v993 = vmax.f32 %v903, 0.0
      %v994 = vmax.f32 %v906, 0.0
      %v995 = vmax.f32 %v911, 0.0
      %v996 = vmax.f32 %v914, 0.0
      %v997 = vmax.f32 %v919, 0.0
      %v998 = vmax.f32 %v922, 0.0
      %v999 = vmax.f32 %v927, 0.0
      %v1000 = vmax.f32 %v930, 0.0
      %v1001 = vmax.f32 %v935, 0.0
      %v1002 = vmax.f32 %v938, 0.0
      %v1003 = vmax.f32 %v943, 0.0
      %v1004 = vmax.f32 %v946, 0.0
      %v1005 = vmax.f32 %v951, 0.0
      %v1006 = vmax.f32 %v954, 0.0
      %v1007 = vmax.f32 %v959, 0.0
      %v1008 = vmax.f32 %v962, 0.0
      %v1009 = vmax.f32 %v967, 0.0
      %v1010 = vmax.f32 %v970, 0.0
      %v1011 = vmax.f32 %v975, 0.0
      %v1012 = vmax.f32 %v978, 0.0
      %v1013 = vpack.c.bf16 %v982, %v981
      %v1014 = vpack.c.bf16 %v984, %v983
      %v1015 = vpack.c.bf16 %v986, %v985
      %v1016 = vpack.c.bf16 %v988, %v987
      %v1017 = vpack.c.bf16 %v990, %v989
      %v1018 = vpack.c.bf16 %v992, %v991
      %v1019 = vpack.c.bf16 %v994, %v993
      %v1020 = vpack.c.bf16 %v996, %v995
      %v1021 = vpack.c.bf16 %v998, %v997
      %v1022 = vpack.c.bf16 %v1000, %v999
      %v1023 = vpack.c.bf16 %v1002, %v1001
      %v1024 = vpack.c.bf16 %v1004, %v1003
      %v1025 = vpack.c.bf16 %v1006, %v1005
      %v1026 = vpack.c.bf16 %v1008, %v1007
      %v1027 = vpack.c.bf16 %v1010, %v1009
      %v1028 = vpack.c.bf16 %v1012, %v1011
      %v1029 = vld [vmem:[#allocation9] sm:$0xf]
      %v1030 = vld [vmem:[#allocation9 + $0x4] sm:$0xf]
      %v1031 = vld [vmem:[#allocation9 + $0x8] sm:$0xf]
      %v1032 = vld [vmem:[#allocation9 + $0xc] sm:$0xf]
      %v1033 = vld [vmem:[#allocation9 + $0x10] sm:$0xf]
      %v1034 = vld [vmem:[#allocation9 + $0x14] sm:$0xf]
      %v1035 = vld [vmem:[#allocation9 + $0x18] sm:$0xf]
      %v1036 = vld [vmem:[#allocation9 + $0x1c] sm:$0xf]
      %v1037 = vld [vmem:[#allocation9 + $0x20] sm:$0xf]
      %v1038 = vld [vmem:[#allocation9 + $0x24] sm:$0xf]
      %v1039 = vld [vmem:[#allocation9 + $0x28] sm:$0xf]
      %v1040 = vld [vmem:[#allocation9 + $0x2c] sm:$0xf]
      %v1041 = vld [vmem:[#allocation9 + $0x30] sm:$0xf]
      %v1042 = vld [vmem:[#allocation9 + $0x34] sm:$0xf]
      %v1043 = vld [vmem:[#allocation9 + $0x38] sm:$0xf]
      %v1044 = vld [vmem:[#allocation9 + $0x3c] sm:$0xf]
      %v1045 = vld [vmem:[%s5] sm:$0x1]
      %v1047 = vlaneseq
      %v1048 = vshrl.u32 %v1047, 7
      %v1049 = vsub.s32 0, %v1048
      %v1050 = vrot.slane %v1045, %v1049
      %v1068 = vunpack.c.l.b16 %v1029
      %v1069 = vunpack.c.l.b16 %v1030
      %v1070 = vunpack.c.l.b16 %v1031
      %v1071 = vunpack.c.l.b16 %v1032
      %v1072 = vunpack.c.l.b16 %v1033
      %v1073 = vunpack.c.l.b16 %v1034
      %v1074 = vunpack.c.l.b16 %v1035
      %v1075 = vunpack.c.l.b16 %v1036
      %v1076 = vunpack.c.l.b16 %v1037
      %v1077 = vunpack.c.l.b16 %v1038
      %v1078 = vunpack.c.l.b16 %v1039
      %v1079 = vunpack.c.l.b16 %v1040
      %v1080 = vunpack.c.l.b16 %v1041
      %v1081 = vunpack.c.l.b16 %v1042
      %v1082 = vunpack.c.l.b16 %v1043
      %v1083 = vunpack.c.l.b16 %v1044
      %v1084 = vpack.c.b16 %v1069, %v1068
      %v1085 = vpack.c.b16 %v1071, %v1070
      %v1086 = vpack.c.b16 %v1073, %v1072
      %v1087 = vpack.c.b16 %v1075, %v1074
      %v1088 = vpack.c.b16 %v1077, %v1076
      %v1089 = vpack.c.b16 %v1079, %v1078
      %v1090 = vpack.c.b16 %v1081, %v1080
      %v1091 = vpack.c.b16 %v1083, %v1082
      %1100 = vmatprep.subr.bf16.mxu0 0
      %1101 = vmatpush1.bf16.msra.mxu0 %v1084
      %1102 = vmatprep.subr.bf16.mxu0 0
      %1103 = vmatpush1.bf16.msra.mxu0 %v1085
      %1104 = vmatprep.subr.bf16.mxu0 0
      %1105 = vmatpush1.bf16.msra.mxu0 %v1086
      %1106 = vmatprep.subr.bf16.mxu0 0
      %1107 = vmatpush1.bf16.msra.mxu0 %v1087
      %1108 = vmatprep.subr.bf16.mxu0 0
      %1109 = vmatpush1.bf16.msra.mxu0 %v1088
      %1110 = vmatprep.subr.bf16.mxu0 0
      %1111 = vmatpush1.bf16.msra.mxu0 %v1089
      %1112 = vmatprep.subr.bf16.mxu0 0
      %1113 = vmatpush1.bf16.msra.mxu0 %v1090
      %1114 = vmatprep.subr.bf16.mxu0 0
      %1115 = vmatpush1.bf16.msra.mxu0 %v1091
      %1116 = vmatprep.subr.bf16.mxu0 0
      %1117 = vmatpush1.bf16.msra.mxu0 0
      %1118 = vmatprep.subr.bf16.mxu0 0
      %1119 = vmatpush1.bf16.msra.mxu0 0
      %1120 = vmatprep.subr.bf16.mxu0 0
      %1121 = vmatpush1.bf16.msra.mxu0 0
      %1122 = vmatprep.subr.bf16.mxu0 0
      %1123 = vmatpush1.bf16.msra.mxu0 0
      %1124 = vmatprep.subr.bf16.mxu0 0
      %1125 = vmatpush1.bf16.msra.mxu0 0
      %1126 = vmatprep.subr.bf16.mxu0 0
      %1127 = vmatpush1.bf16.msra.mxu0 0
      %1128 = vmatprep.subr.bf16.mxu0 0
      %1129 = vmatpush1.bf16.msra.mxu0 0
      %1130 = vmatprep.subr.bf16.mxu0 0
      %1131 = vmatpush1.bf16.msra.mxu0 0
      %1132 = vmatprep.mubr.bf16.mxu0 0
      %1133 = vmatmul.mubr.bf16.gmra.mrb[0].mxu0 %v1013
      %v1134 = vpop.f32.mrb[0].mxu0
      %v1135 = vadd.f32 %v1050, %v1134
      %v1136 = vpop.f32.mrb[0].mxu0
      %v1137 = vpop.f32.mrb[0].mxu0
      %v1138 = vadd.f32 %v1050, %v1137
      %v1139 = vpop.f32.mrb[0].mxu0
      %1140 = vmatprep.mubr.bf16.mxu0 0
      %1141 = vmatmul.mubr.bf16.gmra.mrb[0].mxu0 %v1014
      %v1142 = vpop.f32.mrb[0].mxu0
      %v1143 = vadd.f32 %v1050, %v1142
      %v1144 = vpop.f32.mrb[0].mxu0
      %v1145 = vpop.f32.mrb[0].mxu0
      %v1146 = vadd.f32 %v1050, %v1145
      %v1147 = vpop.f32.mrb[0].mxu0
      %1148 = vmatprep.mubr.bf16.mxu0 0
      %1149 = vmatmul.mubr.bf16.gmra.mrb[0].mxu0 %v1015
      %v1150 = vpop.f32.mrb[0].mxu0
      %v1151 = vadd.f32 %v1050, %v1150
      %v1152 = vpop.f32.mrb[0].mxu0
      %v1153 = vpop.f32.mrb[0].mxu0
      %v1154 = vadd.f32 %v1050, %v1153
      %v1155 = vpop.f32.mrb[0].mxu0
      %1156 = vmatprep.mubr.bf16.mxu0 0
      %1157 = vmatmul.mubr.bf16.gmra.mrb[0].mxu0 %v1016
      %v1158 = vpop.f32.mrb[0].mxu0
      %v1159 = vadd.f32 %v1050, %v1158
      %v1160 = vpop.f32.mrb[0].mxu0
      %v1161 = vpop.f32.mrb[0].mxu0
      %v1162 = vadd.f32 %v1050, %v1161
      %v1163 = vpop.f32.mrb[0].mxu0
      %1164 = vmatprep.mubr.bf16.mxu0 0
      %1165 = vmatmul.mubr.bf16.gmra.mrb[0].mxu0 %v1017
      %v1166 = vpop.f32.mrb[0].mxu0
      %v1167 = vadd.f32 %v1050, %v1166
      %v1168 = vpop.f32.mrb[0].mxu0
      %v1169 = vpop.f32.mrb[0].mxu0
      %v1170 = vadd.f32 %v1050, %v1169
      %v1171 = vpop.f32.mrb[0].mxu0
      %1172 = vmatprep.mubr.bf16.mxu0 0
      %1173 = vmatmul.mubr.bf16.gmra.mrb[0].mxu0 %v1018
      %v1174 = vpop.f32.mrb[0].mxu0
      %v1175 = vadd.f32 %v1050, %v1174
      %v1176 = vpop.f32.mrb[0].mxu0
      %v1177 = vpop.f32.mrb[0].mxu0
      %v1178 = vadd.f32 %v1050, %v1177
      %v1179 = vpop.f32.mrb[0].mxu0
      %1180 = vmatprep.mubr.bf16.mxu0 0
      %1181 = vmatmul.mubr.bf16.gmra.mrb[0].mxu0 %v1019
      %v1182 = vpop.f32.mrb[0].mxu0
      %v1183 = vadd.f32 %v1050, %v1182
      %v1184 = vpop.f32.mrb[0].mxu0
      %v1185 = vpop.f32.mrb[0].mxu0
      %v1186 = vadd.f32 %v1050, %v1185
      %v1187 = vpop.f32.mrb[0].mxu0
      %1188 = vmatprep.mubr.bf16.mxu0 0
      %1189 = vmatmul.mubr.bf16.gmra.mrb[0].mxu0 %v1020
      %v1190 = vpop.f32.mrb[0].mxu0
      %v1191 = vadd.f32 %v1050, %v1190
      %v1192 = vpop.f32.mrb[0].mxu0
      %v1193 = vpop.f32.mrb[0].mxu0
      %v1194 = vadd.f32 %v1050, %v1193
      %v1195 = vpop.f32.mrb[0].mxu0
      %1196 = vmatprep.mubr.bf16.mxu0 0
      %1197 = vmatmul.mubr.bf16.gmra.mrb[0].mxu0 %v1021
      %v1198 = vpop.f32.mrb[0].mxu0
      %v1199 = vadd.f32 %v1050, %v1198
      %v1200 = vpop.f32.mrb[0].mxu0
      %v1201 = vpop.f32.mrb[0].mxu0
      %v1202 = vadd.f32 %v1050, %v1201
      %v1203 = vpop.f32.mrb[0].mxu0
      %1204 = vmatprep.mubr.bf16.mxu0 0
      %1205 = vmatmul.mubr.bf16.gmra.mrb[0].mxu0 %v1022
      %v1206 = vpop.f32.mrb[0].mxu0
      %v1207 = vadd.f32 %v1050, %v1206
      %v1208 = vpop.f32.mrb[0].mxu0
      %v1209 = vpop.f32.mrb[0].mxu0
      %v1210 = vadd.f32 %v1050, %v1209
      %v1211 = vpop.f32.mrb[0].mxu0
      %1212 = vmatprep.mubr.bf16.mxu0 0
      %1213 = vmatmul.mubr.bf16.gmra.mrb[0].mxu0 %v1023
      %v1214 = vpop.f32.mrb[0].mxu0
      %v1215 = vadd.f32 %v1050, %v1214
      %v1216 = vpop.f32.mrb[0].mxu0
      %v1217 = vpop.f32.mrb[0].mxu0
      %v1218 = vadd.f32 %v1050, %v1217
      %v1219 = vpop.f32.mrb[0].mxu0
      %1220 = vmatprep.mubr.bf16.mxu0 0
      %1221 = vmatmul.mubr.bf16.gmra.mrb[0].mxu0 %v1024
      %v1222 = vpop.f32.mrb[0].mxu0
      %v1223 = vadd.f32 %v1050, %v1222
      %v1224 = vpop.f32.mrb[0].mxu0
      %v1225 = vpop.f32.mrb[0].mxu0
      %v1226 = vadd.f32 %v1050, %v1225
      %v1227 = vpop.f32.mrb[0].mxu0
      %1228 = vmatprep.mubr.bf16.mxu0 0
      %1229 = vmatmul.mubr.bf16.gmra.mrb[0].mxu0 %v1025
      %v1230 = vpop.f32.mrb[0].mxu0
      %v1231 = vadd.f32 %v1050, %v1230
      %v1232 = vpop.f32.mrb[0].mxu0
      %v1233 = vpop.f32.mrb[0].mxu0
      %v1234 = vadd.f32 %v1050, %v1233
      %v1235 = vpop.f32.mrb[0].mxu0
      %1236 = vmatprep.mubr.bf16.mxu0 0
      %1237 = vmatmul.mubr.bf16.gmra.mrb[0].mxu0 %v1026
      %v1238 = vpop.f32.mrb[0].mxu0
      %v1239 = vadd.f32 %v1050, %v1238
      %v1240 = vpop.f32.mrb[0].mxu0
      %v1241 = vpop.f32.mrb[0].mxu0
      %v1242 = vadd.f32 %v1050, %v1241
      %v1243 = vpop.f32.mrb[0].mxu0
      %1244 = vmatprep.mubr.bf16.mxu0 0
      %1245 = vmatmul.mubr.bf16.gmra.mrb[0].mxu0 %v1027
      %v1246 = vpop.f32.mrb[0].mxu0
      %v1247 = vadd.f32 %v1050, %v1246
      %v1248 = vpop.f32.mrb[0].mxu0
      %v1249 = vpop.f32.mrb[0].mxu0
      %v1250 = vadd.f32 %v1050, %v1249
      %v1251 = vpop.f32.mrb[0].mxu0
      %1252 = vmatprep.mubr.bf16.mxu0 0
      %1253 = vmatmul.mubr.bf16.gmra.mrb[0].mxu0 %v1028
      %v1254 = vpop.f32.mrb[0].mxu0
      %v1255 = vadd.f32 %v1050, %v1254
      %v1256 = vpop.f32.mrb[0].mxu0
      %v1257 = vpop.f32.mrb[0].mxu0
      %v1258 = vadd.f32 %v1050, %v1257
      %v1259 = vpop.f32.mrb[0].mxu0
      %1260 = vdwg.mxu0
      %1261 = vst [vmem:[#allocation11] sm:$0xff] %v1135
      %1262 = vst [vmem:[#allocation11 + $0x8] sm:$0xff] %v1138
      %1263 = vst [vmem:[#allocation11 + $0x10] sm:$0xff] %v1143
      %1264 = vst [vmem:[#allocation11 + $0x18] sm:$0xff] %v1146
      %1265 = vst [vmem:[#allocation11 + $0x20] sm:$0xff] %v1151
      %1266 = vst [vmem:[#allocation11 + $0x28] sm:$0xff] %v1154
      %1267 = vst [vmem:[#allocation11 + $0x30] sm:$0xff] %v1159
      %1268 = vst [vmem:[#allocation11 + $0x38] sm:$0xff] %v1162
      %1269 = vst [vmem:[#allocation11 + $0x40] sm:$0xff] %v1167
      %1270 = vst [vmem:[#allocation11 + $0x48] sm:$0xff] %v1170
      %1271 = vst [vmem:[#allocation11 + $0x50] sm:$0xff] %v1175
      %1272 = vst [vmem:[#allocation11 + $0x58] sm:$0xff] %v1178
      %1273 = vst [vmem:[#allocation11 + $0x60] sm:$0xff] %v1183
      %1274 = vst [vmem:[#allocation11 + $0x68] sm:$0xff] %v1186
      %1275 = vst [vmem:[#allocation11 + $0x70] sm:$0xff] %v1191
      %1276 = vst [vmem:[#allocation11 + $0x78] sm:$0xff] %v1194
      %1277 = vst [vmem:[#allocation11 + $0x80] sm:$0xff] %v1199
      %1278 = vst [vmem:[#allocation11 + $0x88] sm:$0xff] %v1202
      %1279 = vst [vmem:[#allocation11 + $0x90] sm:$0xff] %v1207
      %1280 = vst [vmem:[#allocation11 + $0x98] sm:$0xff] %v1210
      %1281 = vst [vmem:[#allocation11 + $0xa0] sm:$0xff] %v1215
      %1282 = vst [vmem:[#allocation11 + $0xa8] sm:$0xff] %v1218
      %1283 = vst [vmem:[#allocation11 + $0xb0] sm:$0xff] %v1223
      %1284 = vst [vmem:[#allocation11 + $0xb8] sm:$0xff] %v1226
      %1285 = vst [vmem:[#allocation11 + $0xc0] sm:$0xff] %v1231
      %1286 = vst [vmem:[#allocation11 + $0xc8] sm:$0xff] %v1234
      %1287 = vst [vmem:[#allocation11 + $0xd0] sm:$0xff] %v1239
      %1288 = vst [vmem:[#allocation11 + $0xd8] sm:$0xff] %v1242
      %1289 = vst [vmem:[#allocation11 + $0xe0] sm:$0xff] %v1247
      %1290 = vst [vmem:[#allocation11 + $0xe8] sm:$0xff] %v1250
      %1291 = vst [vmem:[#allocation11 + $0xf0] sm:$0xff] %v1255
      %1292 = vst [vmem:[#allocation11 + $0xf8] sm:$0xff] %v1258
    $region49: #{tpu_custom_call.1} parent=1 // pred_fallthru
      _
    // Predicated region
    $region50: #{tpu_custom_call.1} parent=1 // pred_check
      _
    $region51: #{tpu_custom_call.1} parent=1 // pred_check_branch
      %1294 = sbr.rel (0) target = $region53
    $region52: #{tpu_custom_call.1} parent=1 // pred_region
      %s1296 = ssub.s32 4096, 4096
      %1297 = vsyncadd [#allocation5], %s1296
      %s1298 = sshll.u32 [#allocation11], 4
      %s1299 = int_to_ptr.vmem [resolvable:$true] %s1298
      %1304 = dma.vmem_to_hbm [thread:$0]  %s1299, 4096, %s6, [#allocation5], 128, 128, 8
    $region53: #{tpu_custom_call.1} parent=1 // pred_fallthru
      _
    // Predicated region
    $region54: #{tpu_custom_call.1} parent=1 // pred_check
      _
    $region55: #{tpu_custom_call.1} parent=1 // pred_check_branch
      %1306 = sbr.rel (0) target = $region57
    $region56: #{tpu_custom_call.1} parent=1 // pred_region
      %1307 = dma.done [#allocation5], 4096
    $region57: #{tpu_custom_call.1} parent=1 // pred_fallthru
      _
    %1308 = vsyncpa [#allocation4], 1
    %1309 = vsyncpa [#allocation7], 1
    %1310 = vsyncpa [#allocation10], 1
    %1311 = vsyncpa [#allocation5], 1

</llo_original>
